<compile_context>
chip_gen: v7x
topology: tpu7x:2x2x1
jax: 0.10.0
libtpu: 0.0.40
codegen_flags: <defaults>
</compile_context>

<pallas_src>
import functools

import jax
import jax.numpy as jnp
from jax.experimental import pallas as pl
from jax.experimental.pallas import tpu as pltpu


def _round_up(x, m):
    return ((x + m - 1) // m) * m


# ---------------------------------------------------------------------------
# Kernel
# ---------------------------------------------------------------------------
def gesdc_kernel(ges_ref, dc_ref, w1g_ref, w1d_ref, w2_ref, p_ref, out_ref, *,
                 intl_dim, eps=1e-5):
    """Fused forward for both MLPLN branches on one (tile_b, ·) batch tile.

    ges_ref : (tile_b, H)    compute dtype
    dc_ref  : (tile_b, H)    compute dtype
    w1g_ref : (H, 2I)        Wg1 in lanes [:I], zeros in lanes [I:]
    w1d_ref : (H, 2I)        Wd1 in lanes [I:], zeros in lanes [:I]
    w2_ref  : (2I, N_OUT)    vstack(Wg2, Wd2) zero-padded to N_OUT lanes
    p_ref   : (4, PW) f32    rows = [b1_cat, gamma_cat, beta_cat, b2_sum(pad)]
    out_ref : (tile_b, N_OUT)  lane-dense; true logits in [:, :L]
    """
    I = intl_dim
    p = p_ref[...]                                   # small f32 param slab

    # Layer 1: two half-K MXU matmuls, f32 accumulate.  Equals the old
    # block-diagonal product [ges@Wg1 | dc@Wd1] without any wrapper concat.
    h = (jnp.dot(ges_ref[...], w1g_ref[...], preferred_element_type=jnp.float32)
         + jnp.dot(dc_ref[...], w1d_ref[...], preferred_element_type=jnp.float32))
    h = h + p[0, :2 * I]                             # [bg1 | bd1]

    gamma = p[1, :2 * I]
    beta = p[2, :2 * I]

    # Per-branch LayerNorm + SiLU computed full-width with lane masks
    # (no slicing / concat: stays in the native (tile_b, 2I) vreg layout).
    lane = jax.lax.broadcasted_iota(jnp.int32, (1, 2 * I), 1)
    left = lane < I                                  # (1, 2I) lane mask
    inv_i = jnp.float32(1.0 / I)

    sum_l = jnp.sum(jnp.where(left, h, 0.0), axis=-1, keepdims=True)
    sum_r = jnp.sum(jnp.where(left, 0.0, h), axis=-1, keepdims=True)
    mean = jnp.where(left, sum_l * inv_i, sum_r * inv_i)
    c = h - mean
    c2 = c * c
    var_l = jnp.sum(jnp.where(left, c2, 0.0), axis=-1, keepdims=True)
    var_r = jnp.sum(jnp.where(left, 0.0, c2), axis=-1, keepdims=True)
    var = jnp.where(left, var_l * inv_i, var_r * inv_i)

    n = c * jax.lax.rsqrt(var + eps) * gamma + beta  # biased var, eps=1e-5
    act = n * jax.nn.sigmoid(n)                      # SiLU
    # TODO(synk): training-mode dropout (p=0.1) not reproduced; identity here.

    # Layer 2: one stacked matmul whose result already equals g_logit + d_logit.
    out = jnp.dot(act.astype(w2_ref.dtype), w2_ref[...],
                  preferred_element_type=jnp.float32)
    out_ref[...] = (out + p[3, :out.shape[-1]]).astype(out_ref.dtype)


# ---------------------------------------------------------------------------
# Parameter construction / packing (done ONCE, outside the per-call path)
# ---------------------------------------------------------------------------
def init_params(key, enc_hiddim, classify_intldim, logitdim):
    """Deterministic synthetic parameters for both MLPLN branches."""
    ks = jax.random.split(key, 8)

    def linear(kw, kb, din, dout):
        bound = 1.0 / jnp.sqrt(din)
        w = jax.random.uniform(kw, (din, dout), jnp.float32, -bound, bound)
        b = jax.random.uniform(kb, (dout,), jnp.float32, -bound, bound)
        return w, b

    wg1, bg1 = linear(ks[0], ks[1], enc_hiddim, classify_intldim)
    wg2, bg2 = linear(ks[2], ks[3], classify_intldim, logitdim)
    wd1, bd1 = linear(ks[4], ks[5], enc_hiddim, classify_intldim)
    wd2, bd2 = linear(ks[6], ks[7], classify_intldim, logitdim)

    gg = jnp.ones((classify_intldim,), jnp.float32)     # LayerNorm gamma (g)
    betg = jnp.zeros((classify_intldim,), jnp.float32)  # LayerNorm beta  (g)
    gd = jnp.ones((classify_intldim,), jnp.float32)     # LayerNorm gamma (d)
    betd = jnp.zeros((classify_intldim,), jnp.float32)  # LayerNorm beta  (d)

    return dict(wg1=wg1, bg1=bg1, gg=gg, betg=betg, wg2=wg2, bg2=bg2,
                wd1=wd1, bd1=bd1, gd=gd, betd=betd, wd2=wd2, bd2=bd2)


def pack_params(params, compute_dtype=jnp.bfloat16):
    """Pack the 14 per-branch tensors into 4 lane-dense kernel operands.

    Call once; reuse the returned dict for every forward call (hoists the
    block/stack packing and the weight dtype cast off the critical path).
    """
    wg1, wd1 = params["wg1"], params["wd1"]             # (H, I)
    wg2, wd2 = params["wg2"], params["wd2"]             # (I, L)
    H, I = wg1.shape
    L = wg2.shape[1]
    n_out = _round_up(max(L, 1), 128)

    # Layer-1 weights: the two K=H halves of the block-diagonal weight.
    w1g = jnp.zeros((H, 2 * I), jnp.float32).at[:, :I].set(wg1)
    w1d = jnp.zeros((H, 2 * I), jnp.float32).at[:, I:].set(wd1)

    # Layer-2 weights: vertically stacked, zero-padded to a 128-lane output.
    w2 = (jnp.zeros((2 * I, n_out), jnp.float32)
          .at[:I, :L].set(wg2).at[I:, :L].set(wd2))

    # One small f32 slab for all vectors (LN math stays in f32).
    pw = max(2 * I, n_out)
    assert pw >= n_out and pw >= 2 * I                  # guards p[3, :n_out] read
    slab = jnp.zeros((4, pw), jnp.float32)
    slab = slab.at[0, :2 * I].set(jnp.concatenate([params["bg1"], params["bd1"]]))
    slab = slab.at[1, :2 * I].set(jnp.concatenate([params["gg"], params["gd"]]))
    slab = slab.at[2, :2 * I].set(jnp.concatenate([params["betg"], params["betd"]]))
    slab = slab.at[3, :L].set(params["bg2"] + params["bd2"])  # absorbs final add

    return dict(w1g=w1g.astype(compute_dtype),
                w1d=w1d.astype(compute_dtype),
                w2=w2.astype(compute_dtype),
                slab=slab,
                intl_dim=int(I), logitdim=int(L), n_out=int(n_out),
                compute_dtype=compute_dtype)


# ---------------------------------------------------------------------------
# Wrapper
# ---------------------------------------------------------------------------
def gesdc_clf_forward(ges_latent, dc_latent, packed, *,
                      tile_b_max=1024, out_dtype=None, unpad=True):
    B, H = ges_latent.shape
    I = packed["intl_dim"]
    L = packed["logitdim"]
    n_out = packed["n_out"]
    cdt = packed["compute_dtype"]
    out_dtype = cdt if out_dtype is None else out_dtype

    ges = ges_latent.astype(cdt)
    dc = dc_latent.astype(cdt)

    # Batch tiling: no batch padding — grid = cdiv(B, tile_b); the ragged last
    # tile is safe because rows are independent (OOB reads unused, OOB writes
    # dropped).  For B > 8 keep >= 2 grid steps so v7x's two TensorCores both
    # get work; tiles are sublane-aligned (multiple of 8).
    if B <= 8:
        tile_b = B                                    # block == full array dim
    else:
        tile_b = min(tile_b_max, _round_up(pl.cdiv(B, 2), 8))
    grid = (pl.cdiv(B, tile_b),)

    itemsize = jnp.dtype(cdt).itemsize
    cost = pl.CostEstimate(
        flops=2 * (2 * B * H * (2 * I)) + 2 * B * (2 * I) * n_out,
        transcendentals=B * 2 * I,                    # sigmoid per hidden unit
        bytes_accessed=(2 * B * H * itemsize
                        + (packed["w1g"].size + packed["w1d"].size
                           + packed["w2"].size) * itemsize
                        + packed["slab"].size * 4
                        + B * n_out * jnp.dtype(out_dtype).itemsize),
    )

    out_pad = pl.pallas_call(
        functools.partial(gesdc_kernel, intl_dim=I),
        out_shape=jax.ShapeDtypeStruct((B, n_out), out_dtype),
        grid=grid,
        in_specs=[
            pl.BlockSpec((tile_b, H), lambda i: (i, 0)),       # ges (batch-tiled)
            pl.BlockSpec((tile_b, H), lambda i: (i, 0)),       # dc  (batch-tiled)
            pl.BlockSpec(packed["w1g"].shape, lambda i: (0, 0)),  # weights resident
            pl.BlockSpec(packed["w1d"].shape, lambda i: (0, 0)),  # across grid steps
            pl.BlockSpec(packed["w2"].shape, lambda i: (0, 0)),
            pl.BlockSpec(packed["slab"].shape, lambda i: (0, 0)),
        ],
        out_specs=pl.BlockSpec((tile_b, n_out), lambda i: (i, 0)),  # lane-dense
        compiler_params=pltpu.CompilerParams(
            dimension_semantics=("parallel",)),        # v7x: shard across 2 TCs
        cost_estimate=cost,
    )(ges, dc, packed["w1g"], packed["w1d"], packed["w2"], packed["slab"])

    if not unpad:
        return out_pad            # consumer can fuse the [:B, :L] slice itself
    return out_pad[:B, :L]


# ---------------------------------------------------------------------------
# Pure-JAX reference (mirrors the PyTorch forward, eval mode, f32)
# ---------------------------------------------------------------------------
def gesdc_clf_reference(ges_latent, dc_latent, params, eps=1e-5):
    def layernorm(h, gamma, beta):
        mean = jnp.mean(h, axis=-1, keepdims=True)
        var = jnp.mean((h - mean) ** 2, axis=-1, keepdims=True)
        return (h - mean) * jax.lax.rsqrt(var + eps) * gamma + beta

    def branch(x, w1, b1, gamma, beta, w2, b2):
        h = x @ w1 + b1
        h = layernorm(h, gamma, beta)
        h = h * jax.nn.sigmoid(h)          # SiLU; dropout = identity (eval)
        return h @ w2 + b2

    g = branch(ges_latent, params["wg1"], params["bg1"], params["gg"],
               params["betg"], params["wg2"], params["bg2"])
    d = branch(dc_latent, params["wd1"], params["bd1"], params["gd"],
               params["betd"], params["wd2"], params["bd2"])
    return g + d


if __name__ == "__main__":
    # Small shapes consistent with the module:
    #   enc_hiddim=32, classify_intldim=64, logitdim=8, batch=2
    ENC_HIDDIM, INTLDIM, LOGITDIM = 32, 64, 8

    key = jax.random.PRNGKey(0)
    k_ges, k_dc, k_params, k_big = jax.random.split(key, 4)
    params = init_params(k_params, ENC_HIDDIM, INTLDIM, LOGITDIM)

    # --- Small batch (B=2), f32 compute/output: exact-precision check. -----
    B = 2
    ges_latent = jax.random.normal(k_ges, (B, ENC_HIDDIM), jnp.float32)
    dc_latent = jax.random.normal(k_dc, (B, ENC_HIDDIM), jnp.float32)
    ref = gesdc_clf_reference(ges_latent, dc_latent, params)

    packed_f32 = pack_params(params, compute_dtype=jnp.float32)   # packed once
    out = jax.block_until_ready(
        gesdc_clf_forward(ges_latent, dc_latent, packed_f32))
    assert out.shape == (B, LOGITDIM)
    assert jnp.allclose(out, ref, atol=5e-4, rtol=5e-4), "f32 mismatch vs reference"

    # --- Default bf16 path (bf16 matmul operands + bf16 output). -----------
    packed_bf16 = pack_params(params)                             # packed once
    out_bf16 = jax.block_until_ready(
        gesdc_clf_forward(ges_latent, dc_latent, packed_bf16))
    assert out_bf16.shape == (B, LOGITDIM)
    assert jnp.allclose(out_bf16.astype(jnp.float32), ref, atol=1e-1, rtol=5e-2), \
        "bf16 mismatch vs reference"

    # --- Larger ragged batch (B=300 -> 2 grid steps, partial last tile). ---
    B2 = 300
    kg2, kd2 = jax.random.split(k_big)
    ges2 = jax.random.normal(kg2, (B2, ENC_HIDDIM), jnp.float32)
    dc2 = jax.random.normal(kd2, (B2, ENC_HIDDIM), jnp.float32)
    ref2 = gesdc_clf_reference(ges2, dc2, params)
    out2 = jax.block_until_ready(gesdc_clf_forward(ges2, dc2, packed_f32))
    assert out2.shape == (B2, LOGITDIM)
    assert jnp.allclose(out2, ref2, atol=5e-4, rtol=5e-4), \
        "ragged-batch mismatch vs reference"

    print("KERNEL_OK")
</pallas_src>

<mosaic_0001>
module attributes {stable_mosaic.version = 11 : i64} {
  func.func @gesdc_kernel(%arg0: i32, %arg1: memref<2x32xf32, #tpu.memory_space<vmem>>, %arg2: memref<2x32xf32, #tpu.memory_space<vmem>>, %arg3: memref<32x128xf32, #tpu.memory_space<vmem>>, %arg4: memref<32x128xf32, #tpu.memory_space<vmem>>, %arg5: memref<128x128xf32, #tpu.memory_space<vmem>>, %arg6: memref<4x128xf32, #tpu.memory_space<vmem>>, %arg7: memref<2x128xf32, #tpu.memory_space<vmem>>) attributes {dimension_semantics = [#tpu.dimension_semantics<parallel>], iteration_bounds = array<i64: 1>, scalar_prefetch = 0 : i64, scratch_operands = 0 : i64, tpu.core_type = #tpu.core_type<tc>, window_params = [{transform_indices = @transform_0, window_bounds = array<i64: 2, 32>}, {transform_indices = @transform_1, window_bounds = array<i64: 2, 32>}, {pipeline_mode = #tpu.pipeline_mode<synchronous>, transform_indices = @transform_2, window_bounds = array<i64: 32, 128>}, {pipeline_mode = #tpu.pipeline_mode<synchronous>, transform_indices = @transform_3, window_bounds = array<i64: 32, 128>}, {pipeline_mode = #tpu.pipeline_mode<synchronous>, transform_indices = @transform_4, window_bounds = array<i64: 128, 128>}, {pipeline_mode = #tpu.pipeline_mode<synchronous>, transform_indices = @transform_5, window_bounds = array<i64: 4, 128>}, {transform_indices = @transform_6, window_bounds = array<i64: 2, 128>}]} {
    %c0 = arith.constant 0 : index
    %c0_0 = arith.constant 0 : index
    %0 = vector.load %arg6[%c0, %c0_0] : memref<4x128xf32, #tpu.memory_space<vmem>>, vector<4x128xf32>
    %c0_1 = arith.constant 0 : index
    %c0_2 = arith.constant 0 : index
    %1 = vector.load %arg1[%c0_1, %c0_2] : memref<2x32xf32, #tpu.memory_space<vmem>>, vector<2x32xf32>
    %c0_3 = arith.constant 0 : index
    %c0_4 = arith.constant 0 : index
    %2 = vector.load %arg3[%c0_3, %c0_4] : memref<32x128xf32, #tpu.memory_space<vmem>>, vector<32x128xf32>
    %cst = arith.constant dense<0.000000e+00> : vector<2x128xf32>
    %3 = tpu.matmul %1, %2, %cst {dimension_numbers = #tpu.dot_dimension_numbers<[1], [0], [0], [1], [0, 0, 1, 1], [], []>} : vector<2x32xf32>, vector<32x128xf32>, vector<2x128xf32> -> vector<2x128xf32>
    %c0_5 = arith.constant 0 : index
    %c0_6 = arith.constant 0 : index
    %4 = vector.load %arg2[%c0_5, %c0_6] : memref<2x32xf32, #tpu.memory_space<vmem>>, vector<2x32xf32>
    %c0_7 = arith.constant 0 : index
    %c0_8 = arith.constant 0 : index
    %5 = vector.load %arg4[%c0_7, %c0_8] : memref<32x128xf32, #tpu.memory_space<vmem>>, vector<32x128xf32>
    %cst_9 = arith.constant dense<0.000000e+00> : vector<2x128xf32>
    %6 = tpu.matmul %4, %5, %cst_9 {dimension_numbers = #tpu.dot_dimension_numbers<[1], [0], [0], [1], [0, 0, 1, 1], [], []>} : vector<2x32xf32>, vector<32x128xf32>, vector<2x128xf32> -> vector<2x128xf32>
    %7 = arith.addf %3, %6 : vector<2x128xf32>
    %8 = vector.extract_strided_slice %0 {offsets = [0, 0], sizes = [1, 128], strides = [1, 1]} : vector<4x128xf32> to vector<1x128xf32>
    %9 = vector.shape_cast %8 : vector<1x128xf32> to vector<128xf32>
    %10 = vector.shape_cast %9 : vector<128xf32> to vector<1x128xf32>
    %11 = vector.broadcast %10 : vector<1x128xf32> to vector<2x128xf32>
    %12 = arith.addf %7, %11 : vector<2x128xf32>
    %13 = vector.extract_strided_slice %0 {offsets = [1, 0], sizes = [1, 128], strides = [1, 1]} : vector<4x128xf32> to vector<1x128xf32>
    %14 = vector.shape_cast %13 : vector<1x128xf32> to vector<128xf32>
    %15 = vector.extract_strided_slice %0 {offsets = [2, 0], sizes = [1, 128], strides = [1, 1]} : vector<4x128xf32> to vector<1x128xf32>
    %16 = vector.shape_cast %15 : vector<1x128xf32> to vector<128xf32>
    %17 = tpu.iota {dimensions = array<i32: 1>} : vector<1x128xi32>
    %c64_i32 = arith.constant 64 : i32
    %18 = vector.broadcast %c64_i32 : i32 to vector<1x128xi32>
    %19 = arith.cmpi slt, %17, %18 : vector<1x128xi32>
    %cst_10 = arith.constant 0.000000e+00 : f32
    %20 = vector.shape_cast %19 : vector<1x128xi1> to vector<1x128xi1>
    %21 = vector.broadcast %20 : vector<1x128xi1> to vector<2x128xi1>
    %22 = vector.broadcast %cst_10 : f32 to vector<2x128xf32>
    %23 = arith.select %21, %12, %22 : vector<2x128xi1>, vector<2x128xf32>
    %cst_11 = arith.constant dense<0.000000e+00> : vector<2xf32>
    %24 = vector.multi_reduction <add>, %23, %cst_11 [1] : vector<2x128xf32> to vector<2xf32>
    %25 = vector.shape_cast %24 : vector<2xf32> to vector<2x1xf32>
    %cst_12 = arith.constant 0.000000e+00 : f32
    %26 = vector.shape_cast %19 : vector<1x128xi1> to vector<1x128xi1>
    %27 = vector.broadcast %26 : vector<1x128xi1> to vector<2x128xi1>
    %28 = vector.broadcast %cst_12 : f32 to vector<2x128xf32>
    %29 = arith.select %27, %28, %12 : vector<2x128xi1>, vector<2x128xf32>
    %cst_13 = arith.constant dense<0.000000e+00> : vector<2xf32>
    %30 = vector.multi_reduction <add>, %29, %cst_13 [1] : vector<2x128xf32> to vector<2xf32>
    %31 = vector.shape_cast %30 : vector<2xf32> to vector<2x1xf32>
    %cst_14 = arith.constant 1.562500e-02 : f32
    %32 = vector.broadcast %cst_14 : f32 to vector<2x1xf32>
    %33 = arith.mulf %25, %32 : vector<2x1xf32>
    %cst_15 = arith.constant 1.562500e-02 : f32
    %34 = vector.broadcast %cst_15 : f32 to vector<2x1xf32>
    %35 = arith.mulf %31, %34 : vector<2x1xf32>
    %36 = vector.shape_cast %19 : vector<1x128xi1> to vector<1x128xi1>
    %37 = vector.broadcast %36 : vector<1x128xi1> to vector<2x128xi1>
    %38 = vector.shape_cast %33 : vector<2x1xf32> to vector<2x1xf32>
    %39 = vector.broadcast %38 : vector<2x1xf32> to vector<2x128xf32>
    %40 = vector.shape_cast %35 : vector<2x1xf32> to vector<2x1xf32>
    %41 = vector.broadcast %40 : vector<2x1xf32> to vector<2x128xf32>
    %42 = arith.select %37, %39, %41 : vector<2x128xi1>, vector<2x128xf32>
    %43 = arith.subf %12, %42 : vector<2x128xf32>
    %44 = arith.mulf %43, %43 : vector<2x128xf32>
    %cst_16 = arith.constant 0.000000e+00 : f32
    %45 = vector.shape_cast %19 : vector<1x128xi1> to vector<1x128xi1>
    %46 = vector.broadcast %45 : vector<1x128xi1> to vector<2x128xi1>
    %47 = vector.broadcast %cst_16 : f32 to vector<2x128xf32>
    %48 = arith.select %46, %44, %47 : vector<2x128xi1>, vector<2x128xf32>
    %cst_17 = arith.constant dense<0.000000e+00> : vector<2xf32>
    %49 = vector.multi_reduction <add>, %48, %cst_17 [1] : vector<2x128xf32> to vector<2xf32>
    %50 = vector.shape_cast %49 : vector<2xf32> to vector<2x1xf32>
    %cst_18 = arith.constant 0.000000e+00 : f32
    %51 = vector.shape_cast %19 : vector<1x128xi1> to vector<1x128xi1>
    %52 = vector.broadcast %51 : vector<1x128xi1> to vector<2x128xi1>
    %53 = vector.broadcast %cst_18 : f32 to vector<2x128xf32>
    %54 = arith.select %52, %53, %44 : vector<2x128xi1>, vector<2x128xf32>
    %cst_19 = arith.constant dense<0.000000e+00> : vector<2xf32>
    %55 = vector.multi_reduction <add>, %54, %cst_19 [1] : vector<2x128xf32> to vector<2xf32>
    %56 = vector.shape_cast %55 : vector<2xf32> to vector<2x1xf32>
    %cst_20 = arith.constant 1.562500e-02 : f32
    %57 = vector.broadcast %cst_20 : f32 to vector<2x1xf32>
    %58 = arith.mulf %50, %57 : vector<2x1xf32>
    %cst_21 = arith.constant 1.562500e-02 : f32
    %59 = vector.broadcast %cst_21 : f32 to vector<2x1xf32>
    %60 = arith.mulf %56, %59 : vector<2x1xf32>
    %61 = vector.shape_cast %19 : vector<1x128xi1> to vector<1x128xi1>
    %62 = vector.broadcast %61 : vector<1x128xi1> to vector<2x128xi1>
    %63 = vector.shape_cast %58 : vector<2x1xf32> to vector<2x1xf32>
    %64 = vector.broadcast %63 : vector<2x1xf32> to vector<2x128xf32>
    %65 = vector.shape_cast %60 : vector<2x1xf32> to vector<2x1xf32>
    %66 = vector.broadcast %65 : vector<2x1xf32> to vector<2x128xf32>
    %67 = arith.select %62, %64, %66 : vector<2x128xi1>, vector<2x128xf32>
    %cst_22 = arith.constant 9.99999974E-6 : f32
    %68 = vector.broadcast %cst_22 : f32 to vector<2x128xf32>
    %69 = arith.addf %67, %68 : vector<2x128xf32>
    %70 = math.rsqrt %69 : vector<2x128xf32>
    %71 = arith.mulf %43, %70 : vector<2x128xf32>
    %72 = vector.shape_cast %14 : vector<128xf32> to vector<1x128xf32>
    %73 = vector.broadcast %72 : vector<1x128xf32> to vector<2x128xf32>
    %74 = arith.mulf %71, %73 : vector<2x128xf32>
    %75 = vector.shape_cast %16 : vector<128xf32> to vector<1x128xf32>
    %76 = vector.broadcast %75 : vector<1x128xf32> to vector<2x128xf32>
    %77 = arith.addf %74, %76 : vector<2x128xf32>
    %78 = arith.negf %77 : vector<2x128xf32>
    %79 = math.exp %78 : vector<2x128xf32>
    %cst_23 = arith.constant 1.000000e+00 : f32
    %80 = vector.broadcast %cst_23 : f32 to vector<2x128xf32>
    %81 = arith.addf %80, %79 : vector<2x128xf32>
    %82 = arith.divf %80, %81 : vector<2x128xf32>
    %83 = arith.mulf %77, %82 : vector<2x128xf32>
    %c0_24 = arith.constant 0 : index
    %c0_25 = arith.constant 0 : index
    %84 = vector.load %arg5[%c0_24, %c0_25] : memref<128x128xf32, #tpu.memory_space<vmem>>, vector<128x128xf32>
    %cst_26 = arith.constant dense<0.000000e+00> : vector<2x128xf32>
    %85 = tpu.matmul %83, %84, %cst_26 {dimension_numbers = #tpu.dot_dimension_numbers<[1], [0], [0], [1], [0, 0, 1, 1], [], []>} : vector<2x128xf32>, vector<128x128xf32>, vector<2x128xf32> -> vector<2x128xf32>
    %86 = vector.extract_strided_slice %0 {offsets = [3, 0], sizes = [1, 128], strides = [1, 1]} : vector<4x128xf32> to vector<1x128xf32>
    %87 = vector.shape_cast %86 : vector<1x128xf32> to vector<128xf32>
    %88 = vector.shape_cast %87 : vector<128xf32> to vector<1x128xf32>
    %89 = vector.broadcast %88 : vector<1x128xf32> to vector<2x128xf32>
    %90 = arith.addf %85, %89 : vector<2x128xf32>
    %c0_27 = arith.constant 0 : index
    %c0_28 = arith.constant 0 : index
    %91 = vector.load %arg7[%c0_27, %c0_28] : memref<2x128xf32, #tpu.memory_space<vmem>>, vector<2x128xf32>
    tpu.vector_store %arg7[%c0_27, %c0_28], %90 {strides = array<i32>} : memref<2x128xf32, #tpu.memory_space<vmem>>, vector<2x128xf32>,
    return
  }
  func.func @transform_0(%arg0: i32) -> (i32, i32) {
    %c0_i32 = arith.constant 0 : i32
    %c0_i32_0 = arith.constant 0 : i32
    return %arg0, %c0_i32 : i32, i32
  }
  func.func @transform_1(%arg0: i32) -> (i32, i32) {
    %c0_i32 = arith.constant 0 : i32
    %c0_i32_0 = arith.constant 0 : i32
    return %arg0, %c0_i32 : i32, i32
  }
  func.func @transform_2(%arg0: i32) -> (i32, i32) {
    %c0_i32 = arith.constant 0 : i32
    %c0_i32_0 = arith.constant 0 : i32
    %c0_i32_1 = arith.constant 0 : i32
    return %c0_i32, %c0_i32_0 : i32, i32
  }
  func.func @transform_3(%arg0: i32) -> (i32, i32) {
    %c0_i32 = arith.constant 0 : i32
    %c0_i32_0 = arith.constant 0 : i32
    %c0_i32_1 = arith.constant 0 : i32
    return %c0_i32, %c0_i32_0 : i32, i32
  }
  func.func @transform_4(%arg0: i32) -> (i32, i32) {
    %c0_i32 = arith.constant 0 : i32
    %c0_i32_0 = arith.constant 0 : i32
    %c0_i32_1 = arith.constant 0 : i32
    return %c0_i32, %c0_i32_0 : i32, i32
  }
  func.func @transform_5(%arg0: i32) -> (i32, i32) {
    %c0_i32 = arith.constant 0 : i32
    %c0_i32_0 = arith.constant 0 : i32
    %c0_i32_1 = arith.constant 0 : i32
    return %c0_i32, %c0_i32_0 : i32, i32
  }
  func.func @transform_6(%arg0: i32) -> (i32, i32) {
    %c0_i32 = arith.constant 0 : i32
    %c0_i32_0 = arith.constant 0 : i32
    return %arg0, %c0_i32 : i32, i32
  }
}

</mosaic_0001>

<llo_original>
// kernel: tpu_custom_call.1
$region0: #{tpu_custom_call.1}
  #allocation0 [shape = 'u32[]', space=smem, size = 0x4, offset = 0x4, fixed_abs, tag = 'smem constant byte address 0x4 - core index']
  #allocation1 [shape = 'u32[144,128]{1,0:T(1,128)}', space=vmem, size = 0x12000, scoped, tag = 'internal scratch']
  %s0 = inlined_call_operand.hbm [shape: f32[2,32], index: 0, kind: input, shape index: {}]
  %s1 = inlined_call_operand.vmem [shape: f32[2,32], index: 1, kind: input, shape index: {}]
  %s2 = inlined_call_operand.hbm [shape: f32[32,128], index: 2, kind: input, shape index: {}]
  %s3 = inlined_call_operand.hbm [shape: f32[32,128], index: 3, kind: input, shape index: {}]
  %s4 = inlined_call_operand.hbm [shape: f32[128,128], index: 4, kind: input, shape index: {}]
  %s5 = inlined_call_operand.vmem [shape: f32[4,128], index: 5, kind: input, shape index: {}]
  %s6 = inlined_call_operand.hbm [shape: f32[2,128], index: 6, kind: output, shape index: {}]
  %s7 = sld [smem:[#allocation0]]
  $region50: #{tpu_custom_call.1} parent=0
    _
  %s9 = ssub.s32 1, %s7
  %s10 = scalar_select 0, %s9, %s7
  $region1: #{tpu_custom_call.1} parent=0
    #allocation2 [shape = 'u8[1024]{0}', space=vmem, size = 0x400, scoped, tag = 'input window, operand 0, single buffered']
    #allocation3 [shape = 's32[1]{0}', space=sflag, size = 0x4, scoped, tag = 'scoped memory for tpu_custom_call.1']
    #allocation4 [shape = 's32[1]{0}', space=sflag, size = 0x4, scoped, tag = 'scoped memory for tpu_custom_call.1']
    #allocation5 [shape = 'u8[16384]{0}', space=vmem, size = 0x4000, scoped, tag = 'input window, operand 2, single buffered']
    #allocation6 [shape = 's32[1]{0}', space=sflag, size = 0x4, scoped, tag = 'scoped memory for tpu_custom_call.1']
    #allocation7 [shape = 'u8[16384]{0}', space=vmem, size = 0x4000, scoped, tag = 'input window, operand 3, single buffered']
    #allocation8 [shape = 'u8[65536]{0}', space=vmem, size = 0x10000, scoped, tag = 'input window, operand 4, single buffered']
    #allocation9 [shape = 's32[1]{0}', space=sflag, size = 0x4, scoped, tag = 'scoped memory for tpu_custom_call.1']
    #allocation10 [shape = 'u8[1024]{0}', space=vmem, size = 0x400, scoped, tag = 'output window, operand 0, single buffered']
    %11 = vsyncpa [#allocation3], 0
    %12 = vsyncpa [#allocation6], 0
    %13 = vsyncpa [#allocation9], 0
    %14 = vsyncpa [#allocation4], 0
    // Predicated region
    $region2: #{tpu_custom_call.1} parent=1 // pred_check
      _
    $region3: #{tpu_custom_call.1} parent=1 // pred_check_branch
      %16 = sbr.rel (0) target = $region5
    $region4: #{tpu_custom_call.1} parent=1 // pred_region
      %s18 = ssub.s32 32, 32
      %19 = vsyncadd [#allocation3], %s18
      %s21 = sshll.u32 [#allocation2], 4
      %s22 = int_to_ptr.vmem [resolvable:$true] %s21
      %24 = dma.hbm_to_vmem [thread:$0]  %s0, 32, %s22, [#allocation3]
    $region5: #{tpu_custom_call.1} parent=1 // pred_fallthru
      _
    // Predicated region
    $region6: #{tpu_custom_call.1} parent=1 // pred_check
      _
    $region7: #{tpu_custom_call.1} parent=1 // pred_check_branch
      %26 = sbr.rel (0) target = $region9
    $region8: #{tpu_custom_call.1} parent=1 // pred_region
      _
    $region9: #{tpu_custom_call.1} parent=1 // pred_fallthru
      _
    // Predicated region
    $region10: #{tpu_custom_call.1} parent=1 // pred_check
      _
    $region11: #{tpu_custom_call.1} parent=1 // pred_check_branch
      %28 = sbr.rel (0) target = $region13
    $region12: #{tpu_custom_call.1} parent=1 // pred_region
      %s30 = ssub.s32 512, 512
      %31 = vsyncadd [#allocation6], %s30
      %s32 = sshll.u32 [#allocation5], 4
      %s33 = int_to_ptr.vmem [resolvable:$true] %s32
      %38 = dma.hbm_to_vmem [thread:$0]  %s2, 512, %s33, [#allocation6], 128, 128, 8
    $region13: #{tpu_custom_call.1} parent=1 // pred_fallthru
      _
    // Predicated region
    $region14: #{tpu_custom_call.1} parent=1 // pred_check
      _
    $region15: #{tpu_custom_call.1} parent=1 // pred_check_branch
      %40 = sbr.rel (0) target = $region17
    $region16: #{tpu_custom_call.1} parent=1 // pred_region
      %s42 = ssub.s32 512, 512
      %43 = vsyncadd [#allocation6], %s42
      %s44 = sshll.u32 [#allocation7], 4
      %s45 = int_to_ptr.vmem [resolvable:$true] %s44
      %50 = dma.hbm_to_vmem [thread:$0]  %s3, 512, %s45, [#allocation6], 128, 128, 8
    $region17: #{tpu_custom_call.1} parent=1 // pred_fallthru
      _
    // Predicated region
    $region18: #{tpu_custom_call.1} parent=1 // pred_check
      _
    $region19: #{tpu_custom_call.1} parent=1 // pred_check_branch
      %52 = sbr.rel (0) target = $region21
    $region20: #{tpu_custom_call.1} parent=1 // pred_region
      %s54 = ssub.s32 2048, 2048
      %55 = vsyncadd [#allocation9], %s54
      %s56 = sshll.u32 [#allocation8], 4
      %s57 = int_to_ptr.vmem [resolvable:$true] %s56
      %62 = dma.hbm_to_vmem [thread:$0]  %s4, 2048, %s57, [#allocation9], 128, 128, 8
    $region21: #{tpu_custom_call.1} parent=1 // pred_fallthru
      _
    // Predicated region
    $region22: #{tpu_custom_call.1} parent=1 // pred_check
      _
    $region23: #{tpu_custom_call.1} parent=1 // pred_check_branch
      %64 = sbr.rel (0) target = $region25
    $region24: #{tpu_custom_call.1} parent=1 // pred_region
      _
    $region25: #{tpu_custom_call.1} parent=1 // pred_fallthru
      _
    // Predicated region
    $region26: #{tpu_custom_call.1} parent=1 // pred_check
      _
    $region27: #{tpu_custom_call.1} parent=1 // pred_check_branch
      %66 = sbr.rel (0) target = $region29
    $region28: #{tpu_custom_call.1} parent=1 // pred_region
      %67 = dma.done [#allocation3], 32
    $region29: #{tpu_custom_call.1} parent=1 // pred_fallthru
      _
    // Predicated region
    $region30: #{tpu_custom_call.1} parent=1 // pred_check
      _
    $region31: #{tpu_custom_call.1} parent=1 // pred_check_branch
      %69 = sbr.rel (0) target = $region33
    $region32: #{tpu_custom_call.1} parent=1 // pred_region
      %70 = dma.done [#allocation6], 512
    $region33: #{tpu_custom_call.1} parent=1 // pred_fallthru
      _
    // Predicated region
    $region34: #{tpu_custom_call.1} parent=1 // pred_check
      _
    $region35: #{tpu_custom_call.1} parent=1 // pred_check_branch
      %72 = sbr.rel (0) target = $region37
    $region36: #{tpu_custom_call.1} parent=1 // pred_region
      %73 = dma.done [#allocation6], 512
    $region37: #{tpu_custom_call.1} parent=1 // pred_fallthru
      _
    // Predicated region
    $region38: #{tpu_custom_call.1} parent=1 // pred_check
      _
    $region39: #{tpu_custom_call.1} parent=1 // pred_check_branch
      %75 = sbr.rel (0) target = $region41
    $region40: #{tpu_custom_call.1} parent=1 // pred_region
      %76 = dma.done [#allocation9], 2048
    $region41: #{tpu_custom_call.1} parent=1 // pred_fallthru
      _
    %v77 = vld [vmem:[%s5] sm:$0xf]
    %v78 = vld [vmem:[#allocation2] sm:$0x3]
    %v79 = vld [vmem:[#allocation5] sm:$0xff]
    %v80 = vld [vmem:[#allocation5 + $0x8] sm:$0xff]
    %v81 = vld [vmem:[#allocation5 + $0x10] sm:$0xff]
    %v82 = vld [vmem:[#allocation5 + $0x18] sm:$0xff]
    %v83 = vld [vmem:[%s1] sm:$0x3]
    %v84 = vld [vmem:[#allocation7] sm:$0xff]
    %v85 = vld [vmem:[#allocation7 + $0x8] sm:$0xff]
    %v86 = vld [vmem:[#allocation7 + $0x10] sm:$0xff]
    %v87 = vld [vmem:[#allocation7 + $0x18] sm:$0xff]
    %vm88 = vcmask 261120
    %v90 = vsel %vm88, %v83, 0
    %92 = vmatprep.subr.mxu0 0.0
    %93 = vmatpush1.msra.mxu0 %v84
    %94 = vmatprep.subr.mxu0 0.0
    %95 = vmatpush1.msra.mxu0 %v85
    %96 = vmatprep.subr.mxu0 0.0
    %97 = vmatpush1.msra.mxu0 %v86
    %98 = vmatprep.subr.mxu0 0.0
    %99 = vmatpush1.msra.mxu0 %v87
    %100 = vmatprep.subr.mxu0 0.0
    %101 = vmatpush1.msra.mxu0 0.0
    %102 = vmatprep.subr.mxu0 0.0
    %103 = vmatpush1.msra.mxu0 0.0
    %104 = vmatprep.subr.mxu0 0.0
    %105 = vmatpush1.msra.mxu0 0.0
    %106 = vmatprep.subr.mxu0 0.0
    %107 = vmatpush1.msra.mxu0 0.0
    %108 = vmatprep.subr.mxu0 0.0
    %109 = vmatpush1.msra.mxu0 0.0
    %110 = vmatprep.subr.mxu0 0.0
    %111 = vmatpush1.msra.mxu0 0.0
    %112 = vmatprep.subr.mxu0 0.0
    %113 = vmatpush1.msra.mxu0 0.0
    %114 = vmatprep.subr.mxu0 0.0
    %115 = vmatpush1.msra.mxu0 0.0
    %116 = vmatprep.subr.mxu0 0.0
    %117 = vmatpush1.msra.mxu0 0.0
    %118 = vmatprep.subr.mxu0 0.0
    %119 = vmatpush1.msra.mxu0 0.0
    %120 = vmatprep.subr.mxu0 0.0
    %121 = vmatpush1.msra.mxu0 0.0
    %122 = vmatprep.subr.mxu0 0.0
    %123 = vmatpush1.msra.mxu0 0.0
    %124 = vmatprep.subr.mxu0 0.0
    %125 = vmatpush1.msra.mxu0 0.0
    %126 = vmatprep.subr.mxu0 0.0
    %127 = vmatpush1.msra.mxu0 0.0
    %128 = vmatprep.subr.mxu0 0.0
    %129 = vmatpush1.msra.mxu0 0.0
    %130 = vmatprep.subr.mxu0 0.0
    %131 = vmatpush1.msra.mxu0 0.0
    %132 = vmatprep.subr.mxu0 0.0
    %133 = vmatpush1.msra.mxu0 0.0
    %134 = vmatprep.subr.mxu0 0.0
    %135 = vmatpush1.msra.mxu0 0.0
    %136 = vmatprep.subr.mxu0 0.0
    %137 = vmatpush1.msra.mxu0 0.0
    %138 = vmatprep.subr.mxu0 0.0
    %139 = vmatpush1.msra.mxu0 0.0
    %140 = vmatprep.subr.mxu0 0.0
    %141 = vmatpush1.msra.mxu0 0.0
    %142 = vmatprep.subr.mxu0 0.0
    %143 = vmatpush1.msra.mxu0 0.0
    %144 = vmatprep.subr.mxu0 0.0
    %145 = vmatpush1.msra.mxu0 0.0
    %146 = vmatprep.subr.mxu0 0.0
    %147 = vmatpush1.msra.mxu0 0.0
    %148 = vmatprep.subr.mxu0 0.0
    %149 = vmatpush1.msra.mxu0 0.0
    %150 = vmatprep.subr.mxu0 0.0
    %151 = vmatpush1.msra.mxu0 0.0
    %152 = vmatprep.subr.mxu0 0.0
    %153 = vmatpush1.msra.mxu0 0.0
    %154 = vmatprep.subr.mxu0 0.0
    %155 = vmatpush1.msra.mxu0 0.0
    %156 = vmatprep.mubr.f32.mxu0 0.0
    %157 = vmatmul.mubr.f32.gmra.mrb[0].mxu0 %v90
    %v158 = vpop.f32.mrb[0].mxu0
    %v159 = vadd.f32 0.0, %v158
    %v160 = vpop.f32.mrb[0].mxu0
    %161 = vdwg.mxu0
    %v163 = vsel %vm88, %v78, 0
    %165 = vmatprep.subr.mxu0 0.0
    %166 = vmatpush1.msra.mxu0 %v79
    %167 = vmatprep.subr.mxu0 0.0
    %168 = vmatpush1.msra.mxu0 %v80
    %169 = vmatprep.subr.mxu0 0.0
    %170 = vmatpush1.msra.mxu0 %v81
    %171 = vmatprep.subr.mxu0 0.0
    %172 = vmatpush1.msra.mxu0 %v82
    %173 = vmatprep.subr.mxu0 0.0
    %174 = vmatpush1.msra.mxu0 0.0
    %175 = vmatprep.subr.mxu0 0.0
    %176 = vmatpush1.msra.mxu0 0.0
    %177 = vmatprep.subr.mxu0 0.0
    %178 = vmatpush1.msra.mxu0 0.0
    %179 = vmatprep.subr.mxu0 0.0
    %180 = vmatpush1.msra.mxu0 0.0
    %181 = vmatprep.subr.mxu0 0.0
    %182 = vmatpush1.msra.mxu0 0.0
    %183 = vmatprep.subr.mxu0 0.0
    %184 = vmatpush1.msra.mxu0 0.0
    %185 = vmatprep.subr.mxu0 0.0
    %186 = vmatpush1.msra.mxu0 0.0
    %187 = vmatprep.subr.mxu0 0.0
    %188 = vmatpush1.msra.mxu0 0.0
    %189 = vmatprep.subr.mxu0 0.0
    %190 = vmatpush1.msra.mxu0 0.0
    %191 = vmatprep.subr.mxu0 0.0
    %192 = vmatpush1.msra.mxu0 0.0
    %193 = vmatprep.subr.mxu0 0.0
    %194 = vmatpush1.msra.mxu0 0.0
    %195 = vmatprep.subr.mxu0 0.0
    %196 = vmatpush1.msra.mxu0 0.0
    %197 = vmatprep.subr.mxu0 0.0
    %198 = vmatpush1.msra.mxu0 0.0
    %199 = vmatprep.subr.mxu0 0.0
    %200 = vmatpush1.msra.mxu0 0.0
    %201 = vmatprep.subr.mxu0 0.0
    %202 = vmatpush1.msra.mxu0 0.0
    %203 = vmatprep.subr.mxu0 0.0
    %204 = vmatpush1.msra.mxu0 0.0
    %205 = vmatprep.subr.mxu0 0.0
    %206 = vmatpush1.msra.mxu0 0.0
    %207 = vmatprep.subr.mxu0 0.0
    %208 = vmatpush1.msra.mxu0 0.0
    %209 = vmatprep.subr.mxu0 0.0
    %210 = vmatpush1.msra.mxu0 0.0
    %211 = vmatprep.subr.mxu0 0.0
    %212 = vmatpush1.msra.mxu0 0.0
    %213 = vmatprep.subr.mxu0 0.0
    %214 = vmatpush1.msra.mxu0 0.0
    %215 = vmatprep.subr.mxu0 0.0
    %216 = vmatpush1.msra.mxu0 0.0
    %217 = vmatprep.subr.mxu0 0.0
    %218 = vmatpush1.msra.mxu0 0.0
    %219 = vmatprep.subr.mxu0 0.0
    %220 = vmatpush1.msra.mxu0 0.0
    %221 = vmatprep.subr.mxu0 0.0
    %222 = vmatpush1.msra.mxu0 0.0
    %223 = vmatprep.subr.mxu0 0.0
    %224 = vmatpush1.msra.mxu0 0.0
    %225 = vmatprep.subr.mxu0 0.0
    %226 = vmatpush1.msra.mxu0 0.0
    %227 = vmatprep.subr.mxu0 0.0
    %228 = vmatpush1.msra.mxu0 0.0
    %229 = vmatprep.mubr.f32.mxu0 0.0
    %230 = vmatmul.mubr.f32.gmra.mrb[0].mxu0 %v163
    %v231 = vpop.f32.mrb[0].mxu0
    %v232 = vadd.f32 %v159, %v231
    %v233 = vpop.f32.mrb[0].mxu0
    %234 = vdwg.mxu0
    %v235 = vlaneseq
    %v236 = vshrl.u32 %v235, 7
    %v237 = vsub.s32 0, %v236
    %v238 = vrot.slane %v77, %v237
    %v239 = vadd.f32 %v232, %v238
    %v240 = vlaneseq
    %v241 = vand.u32 %v240, 127
    %vm242 = vcmp.lt.s32.totalorder %v241, 64
    %v243 = vsel %vm242, 1, 0
    %vm244 = vcmp.eq.s32.totalorder %v243, 1
    %v245 = vsel %vm244, %v239, 0.0
    %vm246 = vcmask 1041408
    %v247 = vsel %vm246, %v245, 0.0
    %248 = vadd.xlane.f32.xlu0 %v247
    %v249 = vpop.xlane.xlu0 %248
    %v250 = vsel %vm244, 0.0, %v239
    %v251 = vsel %vm246, %v250, 0.0
    %252 = vadd.xlane.f32.xlu0 %v251
    %v253 = vpop.xlane.xlu0 %252
    %v254 = vmul.f32 %v249, 0.015625
    %v255 = vmul.f32 %v253, 0.015625
    %v256 = vsel %vm244, %v254, %v255
    %v257 = vsub.f32 %v239, %v256
    %v258 = vmul.f32 %v257, %v257
    %v259 = vsel %vm244, %v258, 0.0
    %v260 = vsel %vm246, %v259, 0.0
    %261 = vadd.xlane.f32.xlu0 %v260
    %v262 = vpop.xlane.xlu0 %261
    %v263 = vsel %vm244, 0.0, %v258
    %v264 = vsel %vm246, %v263, 0.0
    %265 = vadd.xlane.f32.xlu0 %v264
    %v266 = vpop.xlane.xlu0 %265
    %v267 = vmul.f32 %v262, 0.015625
    %v268 = vmul.f32 %v266, 0.015625
    %v269 = vsel %vm244, %v267, %v268
    %v270 = vadd.f32 %v269, 1e-05
    %v271 = vrsqrt.pop %v270
    %v272 = vmul.f32 %v257, %v271
    %v273 = vlaneseq
    %v274 = vshrl.u32 %v273, 7
    %v275 = vsub.s32 1, %v274
    %v276 = vrot.slane %v77, %v275
    %v277 = vmul.f32 %v272, %v276
    %v278 = vlaneseq
    %v279 = vshrl.u32 %v278, 7
    %v280 = vsub.s32 2, %v279
    %v281 = vrot.slane %v77, %v280
    %v282 = vadd.f32 %v277, %v281
    %v283 = vxor.u32 %v282, 2147483648
    %v284 = vmul.f32 %v283, 1.442695
    %v285 = vpow.pop %v284
    %v286 = vadd.f32 %v285, 1.0
    %v287 = vrcp.pop %v286
    %v288 = vmul.f32 1.0, %v287
    %v289 = vmul.f32 %v282, %v288
    %v290 = vld [vmem:[#allocation8] sm:$0xff]
    %v291 = vld [vmem:[#allocation8 + $0x8] sm:$0xff]
    %v292 = vld [vmem:[#allocation8 + $0x10] sm:$0xff]
    %v293 = vld [vmem:[#allocation8 + $0x18] sm:$0xff]
    %v294 = vld [vmem:[#allocation8 + $0x20] sm:$0xff]
    %v295 = vld [vmem:[#allocation8 + $0x28] sm:$0xff]
    %v296 = vld [vmem:[#allocation8 + $0x30] sm:$0xff]
    %v297 = vld [vmem:[#allocation8 + $0x38] sm:$0xff]
    %v298 = vld [vmem:[#allocation8 + $0x40] sm:$0xff]
    %v299 = vld [vmem:[#allocation8 + $0x48] sm:$0xff]
    %v300 = vld [vmem:[#allocation8 + $0x50] sm:$0xff]
    %v301 = vld [vmem:[#allocation8 + $0x58] sm:$0xff]
    %v302 = vld [vmem:[#allocation8 + $0x60] sm:$0xff]
    %v303 = vld [vmem:[#allocation8 + $0x68] sm:$0xff]
    %v304 = vld [vmem:[#allocation8 + $0x70] sm:$0xff]
    %v305 = vld [vmem:[#allocation8 + $0x78] sm:$0xff]
    %v306 = vlaneseq
    %v307 = vshrl.u32 %v306, 7
    %v308 = vsub.s32 3, %v307
    %v309 = vrot.slane %v77, %v308
    %310 = vmatprep.subr.mxu0 0.0
    %311 = vmatpush1.msra.mxu0 %v290
    %312 = vmatprep.subr.mxu0 0.0
    %313 = vmatpush1.msra.mxu0 %v291
    %314 = vmatprep.subr.mxu0 0.0
    %315 = vmatpush1.msra.mxu0 %v292
    %316 = vmatprep.subr.mxu0 0.0
    %317 = vmatpush1.msra.mxu0 %v293
    %318 = vmatprep.subr.mxu0 0.0
    %319 = vmatpush1.msra.mxu0 %v294
    %320 = vmatprep.subr.mxu0 0.0
    %321 = vmatpush1.msra.mxu0 %v295
    %322 = vmatprep.subr.mxu0 0.0
    %323 = vmatpush1.msra.mxu0 %v296
    %324 = vmatprep.subr.mxu0 0.0
    %325 = vmatpush1.msra.mxu0 %v297
    %326 = vmatprep.subr.mxu0 0.0
    %327 = vmatpush1.msra.mxu0 %v298
    %328 = vmatprep.subr.mxu0 0.0
    %329 = vmatpush1.msra.mxu0 %v299
    %330 = vmatprep.subr.mxu0 0.0
    %331 = vmatpush1.msra.mxu0 %v300
    %332 = vmatprep.subr.mxu0 0.0
    %333 = vmatpush1.msra.mxu0 %v301
    %334 = vmatprep.subr.mxu0 0.0
    %335 = vmatpush1.msra.mxu0 %v302
    %336 = vmatprep.subr.mxu0 0.0
    %337 = vmatpush1.msra.mxu0 %v303
    %338 = vmatprep.subr.mxu0 0.0
    %339 = vmatpush1.msra.mxu0 %v304
    %340 = vmatprep.subr.mxu0 0.0
    %341 = vmatpush1.msra.mxu0 %v305
    %342 = vmatprep.subr.mxu0 0.0
    %343 = vmatpush1.msra.mxu0 0.0
    %344 = vmatprep.subr.mxu0 0.0
    %345 = vmatpush1.msra.mxu0 0.0
    %346 = vmatprep.subr.mxu0 0.0
    %347 = vmatpush1.msra.mxu0 0.0
    %348 = vmatprep.subr.mxu0 0.0
    %349 = vmatpush1.msra.mxu0 0.0
    %350 = vmatprep.subr.mxu0 0.0
    %351 = vmatpush1.msra.mxu0 0.0
    %352 = vmatprep.subr.mxu0 0.0
    %353 = vmatpush1.msra.mxu0 0.0
    %354 = vmatprep.subr.mxu0 0.0
    %355 = vmatpush1.msra.mxu0 0.0
    %356 = vmatprep.subr.mxu0 0.0
    %357 = vmatpush1.msra.mxu0 0.0
    %358 = vmatprep.subr.mxu0 0.0
    %359 = vmatpush1.msra.mxu0 0.0
    %360 = vmatprep.subr.mxu0 0.0
    %361 = vmatpush1.msra.mxu0 0.0
    %362 = vmatprep.subr.mxu0 0.0
    %363 = vmatpush1.msra.mxu0 0.0
    %364 = vmatprep.subr.mxu0 0.0
    %365 = vmatpush1.msra.mxu0 0.0
    %366 = vmatprep.subr.mxu0 0.0
    %367 = vmatpush1.msra.mxu0 0.0
    %368 = vmatprep.subr.mxu0 0.0
    %369 = vmatpush1.msra.mxu0 0.0
    %370 = vmatprep.subr.mxu0 0.0
    %371 = vmatpush1.msra.mxu0 0.0
    %372 = vmatprep.subr.mxu0 0.0
    %373 = vmatpush1.msra.mxu0 0.0
    %374 = vmatprep.mubr.f32.mxu0 0.0
    %375 = vmatmul.mubr.f32.gmra.mrb[0].mxu0 %v289
    %v376 = vpop.f32.mrb[0].mxu0
    %v377 = vadd.f32 %v309, %v376
    %v378 = vpop.f32.mrb[0].mxu0
    %379 = vdwg.mxu0
    %380 = vst [vmem:[#allocation10] sm:$0x3] %v377
    // Predicated region
    $region42: #{tpu_custom_call.1} parent=1 // pred_check
      _
    $region43: #{tpu_custom_call.1} parent=1 // pred_check_branch
      %382 = sbr.rel (0) target = $region45
    $region44: #{tpu_custom_call.1} parent=1 // pred_region
      %s384 = ssub.s32 32, 32
      %385 = vsyncadd [#allocation4], %s384
      %s387 = sshll.u32 [#allocation10], 4
      %s388 = int_to_ptr.vmem [resolvable:$true] %s387
      %390 = dma.vmem_to_hbm [thread:$0]  %s388, 32, %s6, [#allocation4]
    $region45: #{tpu_custom_call.1} parent=1 // pred_fallthru
      _
    // Predicated region
    $region46: #{tpu_custom_call.1} parent=1 // pred_check
      _
    $region47: #{tpu_custom_call.1} parent=1 // pred_check_branch
      %392 = sbr.rel (0) target = $region49
    $region48: #{tpu_custom_call.1} parent=1 // pred_region
      %393 = dma.done [#allocation4], 32
    $region49: #{tpu_custom_call.1} parent=1 // pred_fallthru
      _
    %394 = vsyncpa [#allocation3], 1
    %395 = vsyncpa [#allocation6], 1
    %396 = vsyncpa [#allocation9], 1
    %397 = vsyncpa [#allocation4], 1

</llo_original>
